<compile_context>
chip_gen: v7x
topology: tpu7x:2x2x1
jax: 0.10.0
libtpu: 0.0.40
codegen_flags: <defaults>
</compile_context>

<pallas_src>
import jax
import jax.numpy as jnp
from jax import lax
from jax.experimental import pallas as pl
from jax.experimental.pallas import tpu as pltpu


# ---------------------------------------------------------------------------
# Kernel
# ---------------------------------------------------------------------------
def _vq_kernel(x_ref, cb_ref, cbt_ref, cb_sq_ref, idx_ref, q_ref):
    """Per grid step:
        x_ref:     (C, TN)  f32   -- channels on sublanes, spatial on lanes
        cb_ref:    (K, C)   f32   -- codebook (resident, constant index map)
        cbt_ref:   (C, K)   f32   -- pre-transposed codebook (gather matmul)
        cb_sq_ref: (K, 1)   f32   -- ||e_k||^2, hoisted out of the kernel
        idx_ref:   (1, TN)  i32
        q_ref:     (C, TN)  f32
    """
    x = x_ref[...]                                             # (C, TN)
    cb = cb_ref[...]                                           # (K, C)
    k = cb.shape[0]

    # dots[k, n] = <e_k, x_n>  -> (K, TN) on the MXU; lanes stay spatial.
    dots = jnp.dot(cb, x, preferred_element_type=jnp.float32)  # (K, TN)

    # argmin_k(||x||^2 + ||e_k||^2 - 2<x,e_k>) == argmin_k(||e_k||^2 - 2<x,e_k>)
    # (per-row ||x||^2 is constant along the argmin axis; distances are never
    #  returned, so dropping it is safe).
    score = cb_sq_ref[...] - 2.0 * dots                        # (K, TN)

    # argmin over the codebook (sublane) axis, first occurrence on ties
    # (matches torch.argmin).
    iota = lax.broadcasted_iota(jnp.int32, score.shape, 0)     # (K, TN)
    min_s = jnp.min(score, axis=0, keepdims=True)              # (1, TN)
    idx = jnp.min(jnp.where(score == min_s, iota, k),
                  axis=0, keepdims=True)                       # (1, TN) i32
    idx_ref[...] = idx.astype(jnp.int32)

    # Gather via one-hot matmul (MXU-friendly, no dynamic gather):
    #   q[c, n] = sum_k cb[k, c] * onehot[k, n]
    onehot = (iota == idx).astype(jnp.float32)                 # (K, TN)
    q = jnp.dot(cbt_ref[...], onehot,
                preferred_element_type=jnp.float32)            # (C, TN)
    q_ref[...] = q.astype(q_ref.dtype)


# ---------------------------------------------------------------------------
# Tiling / VMEM budgeting
# ---------------------------------------------------------------------------
def _round_up(x, m):
    return ((x + m - 1) // m) * m


def _per_lane_live_bytes(C, K):
    """Live VMEM bytes per lane of the spatial tile, including 8-sublane
    padding of the (C, TN) / (1, TN) blocks and the (K, TN) intermediates."""
    f32 = 4
    c_pad = _round_up(max(C, 1), 8)
    k_pad = _round_up(max(K, 1), 8)
    io = 2 * 2 * c_pad * f32          # x + q tiles, double-buffered, sublane padded
    idx = 2 * 8 * f32                 # (1, TN) i32 tile pads to 8 sublanes, x2 buffers
    live = 4 * k_pad * f32            # dots / score / iota / onehot
    return io + idx + live


def _pick_tiling(hw, batch, C, K, max_tile_hw):
    """Pick (hw_padded, tile_hw, n_tiles): lane-dense (multiple of 128),
    fewest / largest steps, live set <= ~32 MiB (v7x-safe), and >= 2 grid
    steps when B == 1 so both v7x TensorCores get work."""
    hw_pad = _round_up(hw, 128)
    per_lane = _per_lane_live_bytes(C, K)
    vmem_live_budget = 32 * 2**20
    cap = max(128, min(max_tile_hw, (vmem_live_budget // per_lane) // 128 * 128))
    if batch == 1:
        cap = min(cap, max(128, (hw_pad // 2) // 128 * 128))
    if hw_pad <= cap:
        return hw_pad, hw_pad, 1
    n_tiles = -(-hw_pad // cap)
    tile = _round_up(-(-hw_pad // n_tiles), 128)
    hw_pad = tile * n_tiles
    return hw_pad, tile, n_tiles


def _vmem_limit_bytes(tile_hw, C, K):
    """Scoped-VMEM limit for the compiler, with headroom, capped at 48 MiB so
    it is valid on v7x (64 MiB physical) as well as v5e/v6e (128 MiB)."""
    f32 = 4
    k_pad = _round_up(max(K, 1), 8)
    c_pad = _round_up(max(C, 1), 8)
    resident = 2 * (k_pad * 128 + c_pad * 128 + k_pad * 128) * f32  # cb, cb.T, cb_sq
    est = _per_lane_live_bytes(C, K) * tile_hw + resident
    return int(min(max(2 * est, 16 * 2**20), 48 * 2**20))


# ---------------------------------------------------------------------------
# Forward (Pallas) + custom VJP (straight-through estimator)
# ---------------------------------------------------------------------------
def _vq_forward(x_nchw, codebook, *, max_tile_hw=32768):
    """Returns (indices (B*H*W, 1) int32, ori_quantized (B, C, H, W) f32)."""
    B, C, H, W = x_nchw.shape
    K = codebook.shape[0]
    HW = H * W

    hw_pad, tile_hw, n_tiles = _pick_tiling(HW, B, C, K, max_tile_hw)

    # Pure reshape — no HBM-round-trip transpose needed in this layout.
    x3 = x_nchw.reshape(B, C, HW)
    if hw_pad != HW:
        x3 = jnp.pad(x3, ((0, 0), (0, 0), (0, hw_pad - HW)))

    # Hoisted constants (tiny, resident in VMEM across the whole grid).
    cb_t = jnp.transpose(codebook)                               # (C, K)
    cb_sq = jnp.sum(codebook * codebook, axis=1, keepdims=True)  # (K, 1)

    grid = (B, n_tiles)
    idx3, q3 = pl.pallas_call(
        _vq_kernel,
        out_shape=(
            jax.ShapeDtypeStruct((B, 1, hw_pad), jnp.int32),
            jax.ShapeDtypeStruct((B, C, hw_pad), jnp.float32),
        ),
        grid_spec=pltpu.PrefetchScalarGridSpec(
            num_scalar_prefetch=0,
            grid=grid,
            in_specs=[
                # x tile: batch dim squeezed, spatial on lanes.
                pl.BlockSpec((None, C, tile_hw), lambda b, j: (b, 0, j)),
                # Codebook & friends: constant index map -> resident.
                pl.BlockSpec((K, C), lambda b, j: (0, 0)),
                pl.BlockSpec((C, K), lambda b, j: (0, 0)),
                pl.BlockSpec((K, 1), lambda b, j: (0, 0)),
            ],
            out_specs=[
                pl.BlockSpec((None, 1, tile_hw), lambda b, j: (b, 0, j)),
                pl.BlockSpec((None, C, tile_hw), lambda b, j: (b, 0, j)),
            ],
        ),
        compiler_params=pltpu.CompilerParams(
            dimension_semantics=("parallel", "parallel"),
            vmem_limit_bytes=_vmem_limit_bytes(tile_hw, C, K)),
    )(x3, codebook, cb_t, cb_sq)

    if hw_pad != HW:
        idx3 = idx3[:, :, :HW]
        q3 = q3[:, :, :HW]

    # (B, 1, HW) row-major flatten == NHWC flatten order (b, h, w).
    indices = idx3.reshape(B * HW, 1)
    ori_quantized = q3.reshape(B, C, H, W)
    return indices, ori_quantized


@jax.custom_vjp
def vq_quantize(x_nchw, codebook):
    """VQ forward matching PyTorch VQuantized.forward.

    Returns:
        indices:       (B*H*W, 1) int32   (torch uses int64)
        quantized:     (B, C, H, W) f32   -- forward value == codewords (STE in bwd)
        ori_quantized: (B, C, H, W) f32
    """
    indices, ori_q = _vq_forward(x_nchw, codebook)
    # Forward value of `quantized` is the codeword tensor itself; no extra
    # full-tensor elementwise pass.  The straight-through estimator is in the
    # backward rule below.
    return indices, ori_q, ori_q


def _vq_fwd(x_nchw, codebook):
    indices, ori_q = _vq_forward(x_nchw, codebook)
    residuals = (indices, x_nchw.shape, codebook.shape, codebook.dtype)
    return (indices, ori_q, ori_q), residuals


def _vq_bwd(residuals, cotangents):
    indices, x_shape, cb_shape, cb_dtype = residuals
    _, g_quant, g_ori = cotangents      # integer output cotangent is ignored
    B, C, H, W = x_shape
    K, _ = cb_shape
    # STE: d quantized / d x == identity.
    gx = g_quant
    # ori_quantized = codebook[idx]: scatter-add cotangent rows onto codewords.
    g_flat = jnp.transpose(g_ori, (0, 2, 3, 1)).reshape(-1, C).astype(jnp.float32)
    onehot = jax.nn.one_hot(indices[:, 0], K, dtype=jnp.float32)      # (N, K)
    gcb = jnp.dot(onehot.T, g_flat).astype(cb_dtype)                  # (K, C)
    return gx, gcb


vq_quantize.defvjp(_vq_fwd, _vq_bwd)


# ---------------------------------------------------------------------------
# Self-test
# ---------------------------------------------------------------------------
if __name__ == "__main__":
    # Module config: num_embeddings=K, embedding_dim=C (= input channels)
    B, C, H, W = 2, 4, 16, 16
    K = 8

    key = jax.random.PRNGKey(0)
    kx, kcb = jax.random.split(key)
    x = jax.random.normal(kx, (B, C, H, W), dtype=jnp.float32)
    # nn.Embedding weight init: uniform(-1/K, 1/K)
    codebook = jax.random.uniform(kcb, (K, C), dtype=jnp.float32,
                                  minval=-1.0 / K, maxval=1.0 / K)

    indices, quantized, ori_quantized = vq_quantize(x, codebook)
    jax.block_until_ready((indices, quantized, ori_quantized))

    # Reference in plain JAX (same math as the PyTorch forward).
    xf = jnp.transpose(x, (0, 2, 3, 1)).reshape(-1, C)
    dist = (jnp.sum(xf ** 2, axis=1, keepdims=True)
            + jnp.sum(codebook ** 2, axis=1)
            - 2.0 * xf @ codebook.T)
    ref_idx = jnp.argmin(dist, axis=1)
    ref_q = jnp.transpose(codebook[ref_idx].reshape(B, H, W, C), (0, 3, 1, 2))

    assert indices.shape == (B * H * W, 1)
    assert jnp.array_equal(indices[:, 0], ref_idx.astype(jnp.int32))
    assert jnp.allclose(ori_quantized, ref_q, atol=1e-6)
    assert jnp.allclose(quantized, ref_q, atol=1e-6)
    print("KERNEL_OK")
</pallas_src>

<mosaic_0001>
module attributes {stable_mosaic.version = 11 : i64} {
  func.func @_vq_kernel(%arg0: i32, %arg1: i32, %arg2: memref<1x4x256xf32, #tpu.memory_space<vmem>>, %arg3: memref<8x4xf32, #tpu.memory_space<vmem>>, %arg4: memref<4x8xf32, #tpu.memory_space<vmem>>, %arg5: memref<8x1xf32, #tpu.memory_space<vmem>>, %arg6: memref<1x1x256xi32, #tpu.memory_space<vmem>>, %arg7: memref<1x4x256xf32, #tpu.memory_space<vmem>>) attributes {dimension_semantics = [#tpu.dimension_semantics<parallel>, #tpu.dimension_semantics<parallel>], iteration_bounds = array<i64: 2, 1>, scalar_prefetch = 0 : i64, scratch_operands = 0 : i64, tpu.core_type = #tpu.core_type<tc>, window_params = [{transform_indices = @transform_0, window_bounds = array<i64: 1, 4, 256>}, {pipeline_mode = #tpu.pipeline_mode<synchronous>, transform_indices = @transform_1, window_bounds = array<i64: 8, 4>}, {pipeline_mode = #tpu.pipeline_mode<synchronous>, transform_indices = @transform_2, window_bounds = array<i64: 4, 8>}, {pipeline_mode = #tpu.pipeline_mode<synchronous>, transform_indices = @transform_3, window_bounds = array<i64: 8, 1>}, {transform_indices = @transform_4, window_bounds = array<i64: 1, 1, 256>}, {transform_indices = @transform_5, window_bounds = array<i64: 1, 4, 256>}]} {
    %c0 = arith.constant 0 : index
    %c0_0 = arith.constant 0 : index
    %c0_1 = arith.constant 0 : index
    %0 = vector.load %arg2[%c0, %c0_0, %c0_1] : memref<1x4x256xf32, #tpu.memory_space<vmem>>, vector<1x4x256xf32>
    %1 = vector.shape_cast %0 : vector<1x4x256xf32> to vector<4x256xf32>
    %c0_2 = arith.constant 0 : index
    %c0_3 = arith.constant 0 : index
    %2 = vector.load %arg3[%c0_2, %c0_3] : memref<8x4xf32, #tpu.memory_space<vmem>>, vector<8x4xf32>
    %cst = arith.constant dense<0.000000e+00> : vector<8x256xf32>
    %3 = tpu.matmul %2, %1, %cst {dimension_numbers = #tpu.dot_dimension_numbers<[1], [0], [0], [1], [0, 0, 1, 1], [], []>} : vector<8x4xf32>, vector<4x256xf32>, vector<8x256xf32> -> vector<8x256xf32>
    %c0_4 = arith.constant 0 : index
    %c0_5 = arith.constant 0 : index
    %4 = vector.load %arg5[%c0_4, %c0_5] : memref<8x1xf32, #tpu.memory_space<vmem>>, vector<8x1xf32>
    %cst_6 = arith.constant 2.000000e+00 : f32
    %5 = vector.broadcast %cst_6 : f32 to vector<8x256xf32>
    %6 = arith.mulf %5, %3 : vector<8x256xf32>
    %7 = vector.broadcast %4 : vector<8x1xf32> to vector<8x256xf32>
    %8 = arith.subf %7, %6 : vector<8x256xf32>
    %9 = tpu.iota {dimensions = array<i32: 0>} : vector<8x256xi32>
    %cst_7 = arith.constant dense<0x7F800000> : vector<256xf32>
    %10 = vector.multi_reduction <minimumf>, %8, %cst_7 [0] : vector<8x256xf32> to vector<256xf32>
    %11 = vector.shape_cast %10 : vector<256xf32> to vector<1x256xf32>
    %12 = vector.broadcast %11 : vector<1x256xf32> to vector<8x256xf32>
    %13 = arith.cmpf oeq, %8, %12 : vector<8x256xf32>
    %c8_i32 = arith.constant 8 : i32
    %14 = vector.broadcast %c8_i32 : i32 to vector<8x256xi32>
    %15 = arith.select %13, %9, %14 : vector<8x256xi1>, vector<8x256xi32>
    %cst_8 = arith.constant dense<2147483647> : vector<256xi32>
    %16 = vector.multi_reduction <minsi>, %15, %cst_8 [0] : vector<8x256xi32> to vector<256xi32>
    %17 = vector.shape_cast %16 : vector<256xi32> to vector<1x256xi32>
    %c0_9 = arith.constant 0 : index
    %c0_10 = arith.constant 0 : index
    %c0_11 = arith.constant 0 : index
    %18 = vector.load %arg6[%c0_9, %c0_10, %c0_11] : memref<1x1x256xi32, #tpu.memory_space<vmem>>, vector<1x1x256xi32>
    %19 = vector.shape_cast %18 : vector<1x1x256xi32> to vector<1x256xi32>
    %20 = vector.shape_cast %17 : vector<1x256xi32> to vector<1x1x256xi32>
    tpu.vector_store %arg6[%c0_9, %c0_10, %c0_11], %20 {strides = array<i32>} : memref<1x1x256xi32, #tpu.memory_space<vmem>>, vector<1x1x256xi32>,
    %21 = vector.broadcast %17 : vector<1x256xi32> to vector<8x256xi32>
    %22 = arith.cmpi eq, %9, %21 : vector<8x256xi32>
    %23 = arith.extui %22 : vector<8x256xi1> to vector<8x256xi32>
    %24 = arith.sitofp %23 : vector<8x256xi32> to vector<8x256xf32>
    %c0_12 = arith.constant 0 : index
    %c0_13 = arith.constant 0 : index
    %25 = vector.load %arg4[%c0_12, %c0_13] : memref<4x8xf32, #tpu.memory_space<vmem>>, vector<4x8xf32>
    %cst_14 = arith.constant dense<0.000000e+00> : vector<4x256xf32>
    %26 = tpu.matmul %25, %24, %cst_14 {dimension_numbers = #tpu.dot_dimension_numbers<[1], [0], [0], [1], [0, 0, 1, 1], [], []>} : vector<4x8xf32>, vector<8x256xf32>, vector<4x256xf32> -> vector<4x256xf32>
    %c0_15 = arith.constant 0 : index
    %c0_16 = arith.constant 0 : index
    %c0_17 = arith.constant 0 : index
    %27 = vector.load %arg7[%c0_15, %c0_16, %c0_17] : memref<1x4x256xf32, #tpu.memory_space<vmem>>, vector<1x4x256xf32>
    %28 = vector.shape_cast %27 : vector<1x4x256xf32> to vector<4x256xf32>
    %29 = vector.shape_cast %26 : vector<4x256xf32> to vector<1x4x256xf32>
    tpu.vector_store %arg7[%c0_15, %c0_16, %c0_17], %29 {strides = array<i32>} : memref<1x4x256xf32, #tpu.memory_space<vmem>>, vector<1x4x256xf32>,
    return
  }
  func.func @transform_0(%arg0: i32, %arg1: i32) -> (i32, i32, i32) {
    %c0_i32 = arith.constant 0 : i32
    %c0_i32_0 = arith.constant 0 : i32
    return %arg0, %c0_i32, %arg1 : i32, i32, i32
  }
  func.func @transform_1(%arg0: i32, %arg1: i32) -> (i32, i32) {
    %c0_i32 = arith.constant 0 : i32
    %c0_i32_0 = arith.constant 0 : i32
    %c0_i32_1 = arith.constant 0 : i32
    return %c0_i32, %c0_i32_0 : i32, i32
  }
  func.func @transform_2(%arg0: i32, %arg1: i32) -> (i32, i32) {
    %c0_i32 = arith.constant 0 : i32
    %c0_i32_0 = arith.constant 0 : i32
    %c0_i32_1 = arith.constant 0 : i32
    return %c0_i32, %c0_i32_0 : i32, i32
  }
  func.func @transform_3(%arg0: i32, %arg1: i32) -> (i32, i32) {
    %c0_i32 = arith.constant 0 : i32
    %c0_i32_0 = arith.constant 0 : i32
    %c0_i32_1 = arith.constant 0 : i32
    return %c0_i32, %c0_i32_0 : i32, i32
  }
  func.func @transform_4(%arg0: i32, %arg1: i32) -> (i32, i32, i32) {
    %c0_i32 = arith.constant 0 : i32
    %c0_i32_0 = arith.constant 0 : i32
    return %arg0, %c0_i32, %arg1 : i32, i32, i32
  }
  func.func @transform_5(%arg0: i32, %arg1: i32) -> (i32, i32, i32) {
    %c0_i32 = arith.constant 0 : i32
    %c0_i32_0 = arith.constant 0 : i32
    return %arg0, %c0_i32, %arg1 : i32, i32, i32
  }
}

</mosaic_0001>

<llo_original>
// kernel: tpu_custom_call.1
$region0: #{tpu_custom_call.1}
  #allocation0 [shape = 'u32[]', space=smem, size = 0x4, offset = 0x4, fixed_abs, tag = 'smem constant byte address 0x4 - core index']
  #allocation1 [shape = 'u32[144,128]{1,0:T(1,128)}', space=vmem, size = 0x12000, scoped, tag = 'internal scratch']
  %s0 = inlined_call_operand.vmem [shape: f32[2,4,256], index: 0, kind: input, shape index: {}]
  %s1 = inlined_call_operand.vmem [shape: f32[8,4], index: 1, kind: input, shape index: {}]
  %s2 = inlined_call_operand.vmem [shape: f32[4,8], index: 2, kind: input, shape index: {}]
  %s3 = inlined_call_operand.vmem [shape: f32[8,1], index: 3, kind: input, shape index: {}]
  %s4 = inlined_call_operand.hbm [shape: s32[2,1,256], index: 4, kind: output, shape index: {0}]
  %s5 = inlined_call_operand.hbm [shape: f32[2,4,256], index: 5, kind: output, shape index: {1}]
  %6 = xla_tuple %s4, %s5
  %s7 = sld [smem:[#allocation0]]
  $region57: #{tpu_custom_call.1} parent=0
    _
  %s9 = ssub.s32 1, %s7
  %s10 = scalar_select 0, %s9, %s7
  $region1: #{tpu_custom_call.1} parent=0
    #allocation2 [shape = 'u8[2048]{0}', space=vmem, size = 0x800, scoped, tag = 'output window, operand 0']
    #allocation3 [shape = 's32[2]{0}', space=sflag, size = 0x8, scoped, tag = 'scoped memory for tpu_custom_call.1']
    #allocation4 [shape = 'u8[8192]{0}', space=vmem, size = 0x2000, scoped, tag = 'output window, operand 1']
    #allocation5 [shape = 's32[2]{0}', space=sflag, size = 0x8, scoped, tag = 'scoped memory for tpu_custom_call.1']
    %11 = vsyncpa [#allocation3], 0
    %s12 = scalar_lea.sflag [#allocation3], 1
    %13 = vsyncpa %s12, 0
    %14 = vsyncpa [#allocation5], 0
    %s15 = scalar_lea.sflag [#allocation5], 1
    %16 = vsyncpa %s15, 0
    loop: start=0, step=1, limit=4
    $region2: #{tpu_custom_call.1} parent=1 // loop_pre_header
      _
    $region3: #{tpu_custom_call.1} parent=1 // loop_header
      %s18 = sphi 0, %s22
      %p19 = scmp.ge.s32.totalorder %s18, 4
      %s25 = sphi 0, %s37
      %s26 = sphi 0, %s33
      %s27 = sphi 0, %s25
      %s28 = sphi 0, %s26
      %s29 = sphi 0, %s27
      %s30 = sphi 0, %s28
      %s42 = sphi 0, %s44
      %s45 = sphi 0, %s42
      %s46 = sphi 0, %s45
      %s62 = sphi 0, %s46
      %s66 = sphi 0, %s66
      %s68 = sphi 0, %s66
      %s69 = sphi 0, %s68
      %s83 = sphi 0, %s69
      %s87 = sphi 0, %s87
      %s89 = sphi 0, %s87
      %s90 = sphi 0, %s89
      %s104 = sphi 0, %s90
      %s108 = sphi 0, %s108
      %s110 = sphi 0, %s108
      %s111 = sphi 0, %s110
      %s125 = sphi 0, %s111
      %s133 = sphi 0, %s135
      %s136 = sphi 0, %s133
      %s137 = sphi 0, %s136
      %s153 = sphi 0, %s137
      %s161 = sphi 0, %s163
      %s164 = sphi 0, %s161
      %s165 = sphi 0, %s164
      %s181 = sphi 0, %s165
    $region4: #{tpu_custom_call.1} parent=1 // loop_header_branch
      %21 = sbr.rel (%p19) target = $region8
    $region5: #{tpu_custom_call.1} parent=1 // loop_body
      %s23 = ssub.s32 %s18, 1
      %s24 = ssub.s32 %s18, 2
      %s31 = sadd.s32 1, %s26
      %p32 = scmp.ge.s32.totalorder %s31, 1
      %s33 = scalar_select %p32, 0, %s31
      %s34 = sadd.s32 1, %s25
      %s35 = scalar_select %p32, %s34, %s25
      %p36 = scmp.ge.s32.totalorder %s35, 2
      %s37 = scalar_select %p36, 0, %s35
      %s38 = ssub.s32 %s25, %s37
      %s39 = ssub.s32 %s26, %s33
      %s40 = sor.u32 %s38, %s39
      %p41 = scmp.eq.s32.totalorder %s40, 0
      %s43 = sadd.s32 %s42, 1
      %s44 = scalar_select %p41, %s42, %s43
      %p47 = pneg %p41
      %p48 = scmp.eq.s32.totalorder %s18, 1
      %p49 = por %p47, %p48
      %p50 = scmp.ne.s32.totalorder %s42, %s45
      %p51 = scmp.eq.s32.totalorder %s18, 0
      %p52 = por %p50, %p51
      %p53 = scmp.ne.s32.totalorder %s42, %s45
      %p54 = scmp.eq.s32.totalorder %s23, 1
      %p55 = por %p53, %p54
      %p56 = scmp.ne.s32.totalorder %s45, %s46
      %p57 = scmp.eq.s32.totalorder %s23, 0
      %p58 = por %p56, %p57
      %p59 = scmp.ne.s32.totalorder %s45, %s46
      %p60 = scmp.eq.s32.totalorder %s24, 1
      %p61 = por %p59, %p60
      %p63 = scmp.ne.s32.totalorder %s46, %s62
      %p64 = scmp.eq.s32.totalorder %s24, 0
      %p65 = por %p63, %p64
      %s67 = sadd.s32 %s66, 1
      %p70 = scmp.eq.s32.totalorder %s18, 1
      %p71 = scmp.ne.s32.totalorder %s66, %s68
      %p72 = scmp.eq.s32.totalorder %s18, 0
      %p73 = por %p71, %p72
      %p74 = scmp.ne.s32.totalorder %s66, %s68
      %p75 = scmp.eq.s32.totalorder %s23, 1
      %p76 = por %p74, %p75
      %p77 = scmp.ne.s32.totalorder %s68, %s69
      %p78 = scmp.eq.s32.totalorder %s23, 0
      %p79 = por %p77, %p78
      %p80 = scmp.ne.s32.totalorder %s68, %s69
      %p81 = scmp.eq.s32.totalorder %s24, 1
      %p82 = por %p80, %p81
      %p84 = scmp.ne.s32.totalorder %s69, %s83
      %p85 = scmp.eq.s32.totalorder %s24, 0
      %p86 = por %p84, %p85
      %s88 = sadd.s32 %s87, 1
      %p91 = scmp.eq.s32.totalorder %s18, 1
      %p92 = scmp.ne.s32.totalorder %s87, %s89
      %p93 = scmp.eq.s32.totalorder %s18, 0
      %p94 = por %p92, %p93
      %p95 = scmp.ne.s32.totalorder %s87, %s89
      %p96 = scmp.eq.s32.totalorder %s23, 1
      %p97 = por %p95, %p96
      %p98 = scmp.ne.s32.totalorder %s89, %s90
      %p99 = scmp.eq.s32.totalorder %s23, 0
      %p100 = por %p98, %p99
      %p101 = scmp.ne.s32.totalorder %s89, %s90
      %p102 = scmp.eq.s32.totalorder %s24, 1
      %p103 = por %p101, %p102
      %p105 = scmp.ne.s32.totalorder %s90, %s104
      %p106 = scmp.eq.s32.totalorder %s24, 0
      %p107 = por %p105, %p106
      %s109 = sadd.s32 %s108, 1
      %p112 = scmp.eq.s32.totalorder %s18, 1
      %p113 = scmp.ne.s32.totalorder %s108, %s110
      %p114 = scmp.eq.s32.totalorder %s18, 0
      %p115 = por %p113, %p114
      %p116 = scmp.ne.s32.totalorder %s108, %s110
      %p117 = scmp.eq.s32.totalorder %s23, 1
      %p118 = por %p116, %p117
      %p119 = scmp.ne.s32.totalorder %s110, %s111
      %p120 = scmp.eq.s32.totalorder %s23, 0
      %p121 = por %p119, %p120
      %p122 = scmp.ne.s32.totalorder %s110, %s111
      %p123 = scmp.eq.s32.totalorder %s24, 1
      %p124 = por %p122, %p123
      %p126 = scmp.ne.s32.totalorder %s111, %s125
      %p127 = scmp.eq.s32.totalorder %s24, 0
      %p128 = por %p126, %p127
      %s129 = ssub.s32 %s25, %s37
      %s130 = ssub.s32 %s26, %s33
      %s131 = sor.u32 %s129, %s130
      %p132 = scmp.eq.s32.totalorder %s131, 0
      %s134 = sadd.s32 %s133, 1
      %s135 = scalar_select %p132, %s133, %s134
      %p138 = pneg %p132
      %p139 = scmp.eq.s32.totalorder %s18, 1
      %p140 = por %p138, %p139
      %p141 = scmp.ne.s32.totalorder %s133, %s136
      %p142 = scmp.eq.s32.totalorder %s18, 0
      %p143 = por %p141, %p142
      %p144 = scmp.ne.s32.totalorder %s133, %s136
      %p145 = scmp.eq.s32.totalorder %s23, 1
      %p146 = por %p144, %p145
      %p147 = scmp.ne.s32.totalorder %s136, %s137
      %p148 = scmp.eq.s32.totalorder %s23, 0
      %p149 = por %p147, %p148
      %p150 = scmp.ne.s32.totalorder %s136, %s137
      %p151 = scmp.eq.s32.totalorder %s24, 1
      %p152 = por %p150, %p151
      %p154 = scmp.ne.s32.totalorder %s137, %s153
      %p155 = scmp.eq.s32.totalorder %s24, 0
      %p156 = por %p154, %p155
      %s157 = ssub.s32 %s25, %s37
      %s158 = ssub.s32 %s26, %s33
      %s159 = sor.u32 %s157, %s158
      %p160 = scmp.eq.s32.totalorder %s159, 0
      %s162 = sadd.s32 %s161, 1
      %s163 = scalar_select %p160, %s161, %s162
      %p166 = pneg %p160
      %p167 = scmp.eq.s32.totalorder %s18, 1
      %p168 = por %p166, %p167
      %p169 = scmp.ne.s32.totalorder %s161, %s164
      %p170 = scmp.eq.s32.totalorder %s18, 0
      %p171 = por %p169, %p170
      %p172 = scmp.ne.s32.totalorder %s161, %s164
      %p173 = scmp.eq.s32.totalorder %s23, 1
      %p174 = por %p172, %p173
      %p175 = scmp.ne.s32.totalorder %s164, %s165
      %p176 = scmp.eq.s32.totalorder %s23, 0
      %p177 = por %p175, %p176
      %p178 = scmp.ne.s32.totalorder %s164, %s165
      %p179 = scmp.eq.s32.totalorder %s24, 1
      %p180 = por %p178, %p179
      %p182 = scmp.ne.s32.totalorder %s165, %s181
      %p183 = scmp.eq.s32.totalorder %s24, 0
      %p184 = por %p182, %p183
      %p185 = scmp.le.s32.totalorder 1, %s18
      %p186 = scmp.lt.s32.totalorder %s18, 3
      %p187 = pnand %p185, %p186
      %p188 = pneg %p187
      // Predicated region
      $region9: #{tpu_custom_call.1} parent=5 // pred_check
        _
      $region10: #{tpu_custom_call.1} parent=5 // pred_check_branch
        %190 = sbr.rel (%p187) target = $region12
      $region11: #{tpu_custom_call.1} parent=5 // pred_region
        %s191 = ssub.s32 %s18, 1
        // Predicated region
        $region13: #{tpu_custom_call.1} parent=11 // pred_check
          %p192 = pneg %p79
        $region14: #{tpu_custom_call.1} parent=11 // pred_check_branch
          %194 = sbr.rel (%p192) target = $region16
        $region15: #{tpu_custom_call.1} parent=11 // pred_region
          _
        $region16: #{tpu_custom_call.1} parent=11 // pred_fallthru
          _
        // Predicated region
        $region17: #{tpu_custom_call.1} parent=11 // pred_check
          %p195 = pneg %p100
        $region18: #{tpu_custom_call.1} parent=11 // pred_check_branch
          %197 = sbr.rel (%p195) target = $region20
        $region19: #{tpu_custom_call.1} parent=11 // pred_region
          _
        $region20: #{tpu_custom_call.1} parent=11 // pred_fallthru
          _
        // Predicated region
        $region21: #{tpu_custom_call.1} parent=11 // pred_check
          %p198 = pneg %p121
        $region22: #{tpu_custom_call.1} parent=11 // pred_check_branch
          %200 = sbr.rel (%p198) target = $region24
        $region23: #{tpu_custom_call.1} parent=11 // pred_region
          _
        $region24: #{tpu_custom_call.1} parent=11 // pred_fallthru
          _
      $region12: #{tpu_custom_call.1} parent=5 // pred_fallthru
        _
      %p201 = scmp.lt.s32.totalorder %s18, 2
      // Predicated region
      $region25: #{tpu_custom_call.1} parent=5 // pred_check
        %p202 = pneg %p201
      $region26: #{tpu_custom_call.1} parent=5 // pred_check_branch
        %204 = sbr.rel (%p202) target = $region28
      $region27: #{tpu_custom_call.1} parent=5 // pred_region
        // Predicated region
        $region29: #{tpu_custom_call.1} parent=27 // pred_check
          %p205 = pneg %p52
        $region30: #{tpu_custom_call.1} parent=27 // pred_check_branch
          %207 = sbr.rel (%p205) target = $region32
        $region31: #{tpu_custom_call.1} parent=27 // pred_region
          %s208 = smul.u32 2, %s26
          %p209 = scmp.lt.s32.totalorder %s25, 1
          %s210 = scalar_select %p209, %s25, 1
          %p211 = scmp.lt.s32.totalorder %s208, 1
          %s212 = scalar_select %p211, %s208, 1
          %s213 = smul.addr %s210, 2
          %s214 = sadd.s32 %s212, %s213
          %s215 = smul.addr %s214, 4
          %s216 = scalar_lea.vmem %s0, %s215
          %s217 = smul.u32 2, %s26
        $region32: #{tpu_custom_call.1} parent=27 // pred_fallthru
          _
      $region28: #{tpu_custom_call.1} parent=5 // pred_fallthru
        _
      %p218 = scmp.le.s32.totalorder 1, %s18
      %p219 = scmp.lt.s32.totalorder %s18, 3
      %p220 = pnand %p218, %p219
      %p221 = pneg %p220
      // Predicated region
      $region33: #{tpu_custom_call.1} parent=5 // pred_check
        _
      $region34: #{tpu_custom_call.1} parent=5 // pred_check_branch
        %223 = sbr.rel (%p220) target = $region36
      $region35: #{tpu_custom_call.1} parent=5 // pred_region
        %s224 = ssub.s32 %s18, 1
        %s225 = smul.u32 2, %s28
        %p226 = scmp.lt.s32.totalorder %s27, 1
        %s227 = scalar_select %p226, %s27, 1
        %p228 = scmp.lt.s32.totalorder %s225, 1
        %s229 = scalar_select %p228, %s225, 1
        %s230 = smul.addr %s227, 2
        %s231 = sadd.s32 %s229, %s230
        %s232 = smul.addr %s231, 4
        %s233 = scalar_lea.vmem %s0, %s232
        %p234 = pneg %p58
        %p235 = pneg %p55
        %p236 = pneg %p79
        %p237 = pneg %p76
        %p238 = pneg %p100
        %p239 = pneg %p97
        %p240 = pneg %p121
        %p241 = pneg %p118
        %p242 = pneg %p149
        %p243 = pneg %p146
        %s244 = sand.u32 %s136, 1
        %s245 = scalar_lea.sflag [#allocation3], %s244
        %s246 = sand.u32 %s136, 1
        %s247 = smul.addr %s246, 2
        %s248 = scalar_lea.vmem [#allocation2], %s247
        %p249 = pneg %p177
        %p250 = pneg %p174
        %s251 = sand.u32 %s164, 1
        %s252 = scalar_lea.sflag [#allocation5], %s251
        %s253 = sand.u32 %s164, 1
        %s254 = smul.addr %s253, 8
        %s255 = scalar_lea.vmem [#allocation4], %s254
        %s256 = smul.u32 2, %s28
        %p257 = scmp.lt.s32.totalorder %s27, 1
        %s258 = scalar_select %p257, %s27, 1
        %p259 = scmp.lt.s32.totalorder %s256, 1
        %s260 = scalar_select %p259, %s256, 1
        %s261 = smul.addr %s258, 2
        %s262 = sadd.s32 %s260, %s261
        %s263 = smul.addr %s262, 4
        %s264 = scalar_lea.vmem %s0, %s263
        %s265 = smul.u32 2, %s28
        %s266 = smul.u32 2, %s28
        %s267 = smul.u32 2, %s28
        %v268 = vld [vmem:[%s264] sm:$0xff]
        %v269 = vld [vmem:[%s1] sm:$0xff]
        %v271 = vcombine.high %v268, %v268
        %vm272 = vcmask 31744
        %v274 = vsel %vm272, %v269, 0
        %vm276 = vcmask 1043456
        %v277 = vsel %vm276, %v268, 0
        %v279 = vsel %vm276, %v271, 0
        %281 = vmatprep.subr.mxu0 %v279
        %282 = vmatpush1.msra.mxu0 %v277
        %283 = vmatprep.subr.mxu0 0.0
        %284 = vmatpush1.msra.mxu0 0.0
        %285 = vmatprep.subr.mxu0 0.0
        %286 = vmatpush1.msra.mxu0 0.0
        %287 = vmatprep.subr.mxu0 0.0
        %288 = vmatpush1.msra.mxu0 0.0
        %289 = vmatprep.subr.mxu0 0.0
        %290 = vmatpush1.msra.mxu0 0.0
        %291 = vmatprep.subr.mxu0 0.0
        %292 = vmatpush1.msra.mxu0 0.0
        %293 = vmatprep.subr.mxu0 0.0
        %294 = vmatpush1.msra.mxu0 0.0
        %295 = vmatprep.subr.mxu0 0.0
        %296 = vmatpush1.msra.mxu0 0.0
        %297 = vmatprep.subr.mxu0 0.0
        %298 = vmatpush1.msra.mxu0 0.0
        %299 = vmatprep.subr.mxu0 0.0
        %300 = vmatpush1.msra.mxu0 0.0
        %301 = vmatprep.subr.mxu0 0.0
        %302 = vmatpush1.msra.mxu0 0.0
        %303 = vmatprep.subr.mxu0 0.0
        %304 = vmatpush1.msra.mxu0 0.0
        %305 = vmatprep.subr.mxu0 0.0
        %306 = vmatpush1.msra.mxu0 0.0
        %307 = vmatprep.subr.mxu0 0.0
        %308 = vmatpush1.msra.mxu0 0.0
        %309 = vmatprep.subr.mxu0 0.0
        %310 = vmatpush1.msra.mxu0 0.0
        %311 = vmatprep.subr.mxu0 0.0
        %312 = vmatpush1.msra.mxu0 0.0
        %313 = vmatprep.subr.mxu0 0.0
        %314 = vmatpush1.msra.mxu0 0.0
        %315 = vmatprep.subr.mxu0 0.0
        %316 = vmatpush1.msra.mxu0 0.0
        %317 = vmatprep.subr.mxu0 0.0
        %318 = vmatpush1.msra.mxu0 0.0
        %319 = vmatprep.subr.mxu0 0.0
        %320 = vmatpush1.msra.mxu0 0.0
        %321 = vmatprep.subr.mxu0 0.0
        %322 = vmatpush1.msra.mxu0 0.0
        %323 = vmatprep.subr.mxu0 0.0
        %324 = vmatpush1.msra.mxu0 0.0
        %325 = vmatprep.subr.mxu0 0.0
        %326 = vmatpush1.msra.mxu0 0.0
        %327 = vmatprep.subr.mxu0 0.0
        %328 = vmatpush1.msra.mxu0 0.0
        %329 = vmatprep.subr.mxu0 0.0
        %330 = vmatpush1.msra.mxu0 0.0
        %331 = vmatprep.subr.mxu0 0.0
        %332 = vmatpush1.msra.mxu0 0.0
        %333 = vmatprep.subr.mxu0 0.0
        %334 = vmatpush1.msra.mxu0 0.0
        %335 = vmatprep.subr.mxu0 0.0
        %336 = vmatpush1.msra.mxu0 0.0
        %337 = vmatprep.subr.mxu0 0.0
        %338 = vmatpush1.msra.mxu0 0.0
        %339 = vmatprep.subr.mxu0 0.0
        %340 = vmatpush1.msra.mxu0 0.0
        %341 = vmatprep.subr.mxu0 0.0
        %342 = vmatpush1.msra.mxu0 0.0
        %343 = vmatprep.subr.mxu0 0.0
        %344 = vmatpush1.msra.mxu0 0.0
        %345 = vmatprep.mubr.f32.mxu0 0.0
        %346 = vmatmul.mubr.f32.gmra.mrb[0].mxu0 %v274
        %v347 = vpop.f32.mrb[0].mxu0
        %v348 = vadd.f32 0.0, %v347
        %v349 = vpop.f32.mrb[0].mxu0
        %v350 = vadd.f32 0.0, %v349
        %351 = vdwg.mxu0
        %v352 = vld [vmem:[%s3] sm:$0xff]
        %v353 = vmul.f32 %v348, 2.0
        %v354 = vmul.f32 %v350, 2.0
        %356 = vset.pattern.permute.xlu0 0
        %357 = vperm.xlu0 %356, %v352
        %v358 = vpop.permute.xlu0 %357
        %v360 = vsub.f32 %v358, %v353
        %v361 = vsub.f32 %v358, %v354
        %v362 = vlaneseq
        %v363 = vshrl.u32 %v362, 7
        %v364 = vrot.slane %v360, 4
        %v365 = vmin.f32 %v360, %v364
        %v366 = vrot.slane %v365, 2
        %v367 = vmin.f32 %v365, %v366
        %v368 = vrot.slane %v367, 1
        %v369 = vmin.f32 %v367, %v368
        %v370 = vrot.slane %v361, 4
        %v371 = vmin.f32 %v361, %v370
        %v372 = vrot.slane %v371, 2
        %v373 = vmin.f32 %v371, %v372
        %v374 = vrot.slane %v373, 1
        %v375 = vmin.f32 %v373, %v374
        %vm376 = vcmp.eq.f32.partialorder %v360, %v369
        %vm377 = vcmp.eq.f32.partialorder %v361, %v375
        %v378 = vsel %vm376, %v363, 8
        %v379 = vsel %vm377, %v363, 8
        %v380 = vrot.slane %v378, 4
        %vm381 = vcmp.lt.s32.totalorder %v378, %v380
        %v382 = vsel %vm381, %v378, %v380
        %v383 = vrot.slane %v382, 2
        %vm384 = vcmp.lt.s32.totalorder %v382, %v383
        %v385 = vsel %vm384, %v382, %v383
        %v386 = vrot.slane %v385, 1
        %vm387 = vcmp.lt.s32.totalorder %v385, %v386
        %v388 = vsel %vm387, %v385, %v386
        %v389 = vrot.slane %v379, 4
        %vm390 = vcmp.lt.s32.totalorder %v379, %v389
        %v391 = vsel %vm390, %v379, %v389
        %v392 = vrot.slane %v391, 2
        %vm393 = vcmp.lt.s32.totalorder %v391, %v392
        %v394 = vsel %vm393, %v391, %v392
        %v395 = vrot.slane %v394, 1
        %vm396 = vcmp.lt.s32.totalorder %v394, %v395
        %v397 = vsel %vm396, %v394, %v395
        %v398 = vcombine.low %v388, %v397
        %v400 = vunpack.c.l.s4 1966171168
        %v401 = vunpack.c.0.s8 %v400
        %v402 = vlaneseq
        %v403 = vshrl.u32 %v402, 7
        %v404 = vsub.s32 %v401, %v403
        %v405 = vrot.slane %v398, %v404
        %v407 = vunpack.c.l.s4 1966171168
        %v408 = vunpack.c.0.s8 %v407
        %v409 = vlaneseq
        %v410 = vshrl.u32 %v409, 7
        %v411 = vsub.s32 %v408, %v410
        %v412 = vrot.slane %v405, %v411
        %v413 = vlaneseq
        %vm414 = vcmp.ge.s32.totalorder %v413, 0
        %vm415 = vcmp.lt.s32.totalorder %v413, 256
        %vm416 = vmand %vm414, %vm415
        %417 = vst.msk [vmem:[%s248] sm:$0x3] %vm416, %v412
        %vm418 = vcmp.eq.s32.totalorder %v363, %v388
        %vm419 = vcmp.eq.s32.totalorder %v363, %v397
        %v420 = vsel %vm418, 1, 0
        %v421 = vsel %vm419, 1, 0
        %v422 = vcvt.s32.f32 %v420
        %v423 = vcvt.s32.f32 %v421
        %v424 = vld [vmem:[%s2] sm:$0xf]
        %vm425 = vcmask 64512
        %v427 = vsel %vm425, %v424, 0
        %429 = vmatprep.subr.mxu0 %v423
        %430 = vmatpush1.msra.mxu0 %v422
        %431 = vmatprep.subr.mxu0 0.0
        %432 = vmatpush1.msra.mxu0 0.0
        %433 = vmatprep.subr.mxu0 0.0
        %434 = vmatpush1.msra.mxu0 0.0
        %435 = vmatprep.subr.mxu0 0.0
        %436 = vmatpush1.msra.mxu0 0.0
        %437 = vmatprep.subr.mxu0 0.0
        %438 = vmatpush1.msra.mxu0 0.0
        %439 = vmatprep.subr.mxu0 0.0
        %440 = vmatpush1.msra.mxu0 0.0
        %441 = vmatprep.subr.mxu0 0.0
        %442 = vmatpush1.msra.mxu0 0.0
        %443 = vmatprep.subr.mxu0 0.0
        %444 = vmatpush1.msra.mxu0 0.0
        %445 = vmatprep.subr.mxu0 0.0
        %446 = vmatpush1.msra.mxu0 0.0
        %447 = vmatprep.subr.mxu0 0.0
        %448 = vmatpush1.msra.mxu0 0.0
        %449 = vmatprep.subr.mxu0 0.0
        %450 = vmatpush1.msra.mxu0 0.0
        %451 = vmatprep.subr.mxu0 0.0
        %452 = vmatpush1.msra.mxu0 0.0
        %453 = vmatprep.subr.mxu0 0.0
        %454 = vmatpush1.msra.mxu0 0.0
        %455 = vmatprep.subr.mxu0 0.0
        %456 = vmatpush1.msra.mxu0 0.0
        %457 = vmatprep.subr.mxu0 0.0
        %458 = vmatpush1.msra.mxu0 0.0
        %459 = vmatprep.subr.mxu0 0.0
        %460 = vmatpush1.msra.mxu0 0.0
        %461 = vmatprep.subr.mxu0 0.0
        %462 = vmatpush1.msra.mxu0 0.0
        %463 = vmatprep.subr.mxu0 0.0
        %464 = vmatpush1.msra.mxu0 0.0
        %465 = vmatprep.subr.mxu0 0.0
        %466 = vmatpush1.msra.mxu0 0.0
        %467 = vmatprep.subr.mxu0 0.0
        %468 = vmatpush1.msra.mxu0 0.0
        %469 = vmatprep.subr.mxu0 0.0
        %470 = vmatpush1.msra.mxu0 0.0
        %471 = vmatprep.subr.mxu0 0.0
        %472 = vmatpush1.msra.mxu0 0.0
        %473 = vmatprep.subr.mxu0 0.0
        %474 = vmatpush1.msra.mxu0 0.0
        %475 = vmatprep.subr.mxu0 0.0
        %476 = vmatpush1.msra.mxu0 0.0
        %477 = vmatprep.subr.mxu0 0.0
        %478 = vmatpush1.msra.mxu0 0.0
        %479 = vmatprep.subr.mxu0 0.0
        %480 = vmatpush1.msra.mxu0 0.0
        %481 = vmatprep.subr.mxu0 0.0
        %482 = vmatpush1.msra.mxu0 0.0
        %483 = vmatprep.subr.mxu0 0.0
        %484 = vmatpush1.msra.mxu0 0.0
        %485 = vmatprep.subr.mxu0 0.0
        %486 = vmatpush1.msra.mxu0 0.0
        %487 = vmatprep.subr.mxu0 0.0
        %488 = vmatpush1.msra.mxu0 0.0
        %489 = vmatprep.subr.mxu0 0.0
        %490 = vmatpush1.msra.mxu0 0.0
        %491 = vmatprep.subr.mxu0 0.0
        %492 = vmatpush1.msra.mxu0 0.0
        %493 = vmatprep.mubr.f32.mxu0 0.0
        %494 = vmatmul.mubr.f32.gmra.mrb[0].mxu0 %v427
        %v495 = vpop.f32.mrb[0].mxu0
        %v496 = vadd.f32 0.0, %v495
        %v497 = vpop.f32.mrb[0].mxu0
        %v498 = vadd.f32 0.0, %v497
        %499 = vdwg.mxu0
        %v502 = vcombine.low %v496, %v498
        %504 = vst [vmem:[%s255] sm:$0xff] %v502
        %s505 = sand.u32 %s136, 1
        %s506 = scalar_lea.sflag [#allocation3], %s505
        %s507 = sand.u32 %s136, 1
        %s508 = smul.addr %s507, 2
        %s509 = scalar_lea.vmem [#allocation2], %s508
        %s510 = sand.u32 %s164, 1
        %s511 = scalar_lea.sflag [#allocation5], %s510
        %s512 = sand.u32 %s164, 1
        %s513 = smul.addr %s512, 8
        %s514 = scalar_lea.vmem [#allocation4], %s513
        // Predicated region
        $region37: #{tpu_custom_call.1} parent=35 // pred_check
          %p515 = pneg %p146
        $region38: #{tpu_custom_call.1} parent=35 // pred_check_branch
          %517 = sbr.rel (%p515) target = $region40
        $region39: #{tpu_custom_call.1} parent=35 // pred_region
          %s518 = smul.u32 2, %s28
          %s520 = ssub.s32 32, 32
          %521 = vsyncadd %s506, %s520
          %s522 = smul.addr %s27, 2
          %s523 = sadd.s32 %s518, %s522
          %s524 = smul.addr %s523, 16
          %s525 = scalar_lea.hbm %s4, %s524
          %s527 = sshll.u32 %s509, 4
          %s528 = int_to_ptr.vmem [resolvable:$true] %s527
          %530 = dma.vmem_to_hbm [thread:$0]  %s528, 32, %s525, %s506
        $region40: #{tpu_custom_call.1} parent=35 // pred_fallthru
          _
        // Predicated region
        $region41: #{tpu_custom_call.1} parent=35 // pred_check
          %p531 = pneg %p174
        $region42: #{tpu_custom_call.1} parent=35 // pred_check_branch
          %533 = sbr.rel (%p531) target = $region44
        $region43: #{tpu_custom_call.1} parent=35 // pred_region
          %s534 = smul.u32 2, %s28
          %s536 = ssub.s32 128, 128
          %537 = vsyncadd %s511, %s536
          %s538 = smul.addr %s27, 2
          %s539 = sadd.s32 %s534, %s538
          %s540 = smul.addr %s539, 64
          %s541 = scalar_lea.hbm %s5, %s540
          %s543 = sshll.u32 %s514, 4
          %s544 = int_to_ptr.vmem [resolvable:$true] %s543
          %546 = dma.vmem_to_hbm [thread:$0]  %s544, 128, %s541, %s511
        $region44: #{tpu_custom_call.1} parent=35 // pred_fallthru
          _
      $region36: #{tpu_custom_call.1} parent=5 // pred_fallthru
        _
      %p547 = scmp.le.s32.totalorder 2, %s18
      // Predicated region
      $region45: #{tpu_custom_call.1} parent=5 // pred_check
        %p548 = pneg %p547
      $region46: #{tpu_custom_call.1} parent=5 // pred_check_branch
        %550 = sbr.rel (%p548) target = $region48
      $region47: #{tpu_custom_call.1} parent=5 // pred_region
        %s551 = ssub.s32 %s18, 2
        // Predicated region
        $region49: #{tpu_custom_call.1} parent=47 // pred_check
          %p552 = pneg %p152
        $region50: #{tpu_custom_call.1} parent=47 // pred_check_branch
          %554 = sbr.rel (%p552) target = $region52
        $region51: #{tpu_custom_call.1} parent=47 // pred_region
          %s555 = sand.u32 %s137, 1
          %s556 = scalar_lea.sflag [#allocation3], %s555
          %s557 = sand.u32 %s137, 1
          %s558 = smul.addr %s557, 2
          %s559 = scalar_lea.vmem [#allocation2], %s558
          %560 = dma.done %s556, 32
        $region52: #{tpu_custom_call.1} parent=47 // pred_fallthru
          _
        // Predicated region
        $region53: #{tpu_custom_call.1} parent=47 // pred_check
          %p561 = pneg %p180
        $region54: #{tpu_custom_call.1} parent=47 // pred_check_branch
          %563 = sbr.rel (%p561) target = $region56
        $region55: #{tpu_custom_call.1} parent=47 // pred_region
          %s564 = sand.u32 %s165, 1
          %s565 = scalar_lea.sflag [#allocation5], %s564
          %s566 = sand.u32 %s165, 1
          %s567 = smul.addr %s566, 8
          %s568 = scalar_lea.vmem [#allocation4], %s567
          %569 = dma.done %s565, 128
        $region56: #{tpu_custom_call.1} parent=47 // pred_fallthru
          _
      $region48: #{tpu_custom_call.1} parent=5 // pred_fallthru
        _
    $region6: #{tpu_custom_call.1} parent=1 // loop_footer
      %s22 = sadd.s32 1, %s18
    $region7: #{tpu_custom_call.1} parent=1 // loop_footer_branch
      %17 = sbr.rel target = $region3
    $region8: #{tpu_custom_call.1} parent=1 // loop_exit
      _
    %570 = vsyncpa [#allocation3], 1
    %s571 = scalar_lea.sflag [#allocation3], 1
    %572 = vsyncpa %s571, 1
    %573 = vsyncpa [#allocation5], 1
    %s574 = scalar_lea.sflag [#allocation5], 1
    %575 = vsyncpa %s574, 1

</llo_original>
